<compile_context>
chip_gen: v6e
topology: v6e:2x2x1
jax: 0.10.0
libtpu: 0.0.40
codegen_flags: <defaults>
</compile_context>

<pallas_src>
import functools

import jax
import jax.numpy as jnp
from jax.experimental import pallas as pl
from jax.experimental.pallas import tpu as pltpu


def _round_up(x, n):
    return ((x + n - 1) // n) * n


def _vmem_capacity_bytes():
    try:
        return int(pltpu.get_tpu_info().vmem_capacity_bytes)
    except Exception:
        return 64 * 2**20  # conservative: v7x per-TensorCore VMEM


def _sublane_multiple(dtype):
    itemsize = jnp.dtype(dtype).itemsize
    return 8 * max(1, 4 // itemsize)  # 8 (f32) / 16 (bf16) / 32 (int8, fp8)


def _footprint_bytes(tm, tn, tk, k_tiled, in_itemsize, out_itemsize):
    f = 2 * (tm * tk + tk * tn + tn) * in_itemsize  # double-buffered x, w, bias
    f += 2 * tm * tn * out_itemsize                 # double-buffered out tile
    if k_tiled:
        f += tm * tn * 4                            # f32 accumulator scratch
    return f


def _plan_tiles(m, d_in, d_out, in_dtype, out_dtype, budget):
    """Returns (tm, tn, tk, k_tiled) or None if nothing fits (jnp fallback)."""
    in_itemsize = jnp.dtype(in_dtype).itemsize
    out_itemsize = jnp.dtype(out_dtype).itemsize
    sub = _sublane_multiple(in_dtype)

    # Row tile: whole M when small (single M block => weight streamed once),
    # otherwise a large, aligned tile.
    if m <= 1024:
        tm = _round_up(m, sub)
    elif m >= 2048:
        tm = 1024
    else:
        tm = 512

    # N tile: lane-dense multiple of 128; partial last N block is fine.
    tn = min(_round_up(d_out, 128), 512)

    def k_candidates():
        yield d_in, False  # full-K plan (preferred: 2-D grid, no accumulator)
        for t in (2048, 1024, 512, 256, 128):
            if t < d_in and d_in % t == 0:
                yield t, True

    while True:
        for tk, k_tiled in k_candidates():
            if _footprint_bytes(tm, tn, tk, k_tiled,
                                in_itemsize, out_itemsize) <= budget:
                return tm, tn, tk, k_tiled
        # Shrink the larger of tm / tn and retry.
        if tm > sub and tm >= tn:
            tm = max(sub, _round_up(tm // 2, sub))
        elif tn > 128:
            tn = max(128, tn // 2)
        else:
            return None


def _linear_bias_kernel(x_ref, w_ref, b_ref, o_ref):
    """Full-K path: one accumulation chain per (M, N) tile, bias in epilogue."""
    acc = jnp.dot(x_ref[...], w_ref[...], preferred_element_type=jnp.float32)
    o_ref[...] = (acc + b_ref[...].astype(jnp.float32)).astype(o_ref.dtype)


def _linear_bias_acc_kernel(x_ref, w_ref, b_ref, o_ref, acc_ref):
    """K-tiled path: f32 VMEM accumulator; bias folded into the k == 0 init."""
    k = pl.program_id(2)

    @pl.when(k == 0)
    def _():
        acc_ref[...] = jnp.broadcast_to(
            b_ref[...].astype(jnp.float32), acc_ref.shape)

    acc_ref[...] += jnp.dot(x_ref[...], w_ref[...],
                            preferred_element_type=jnp.float32)

    @pl.when(k == pl.num_programs(2) - 1)
    def _():
        o_ref[...] = acc_ref[...].astype(o_ref.dtype)


@functools.partial(jax.jit, static_argnames=("tm", "tn", "tk"))
def conv1d_forward(x, w, b, *, tm=None, tn=None, tk=None):
    """y = x @ w + b with x: [*leading, d_in], w: [d_in, d_out], b: [d_out]."""
    *leading, d_in = x.shape
    d_out = w.shape[1]
    out_dtype = x.dtype

    x2 = x.reshape(-1, d_in)            # [M, d_in]
    m = x2.shape[0]
    b2 = b.reshape(1, d_out)

    vmem_cap = _vmem_capacity_bytes()
    budget = min(int(vmem_cap * 0.70), 112 * 2**20)

    if tm is not None or tn is not None or tk is not None:
        # Explicit override (mainly to exercise the K-tiled accumulator path).
        tk = d_in if tk is None else tk
        if d_in % tk != 0:
            raise ValueError(f"tk={tk} must divide d_in={d_in} exactly")
        sub = _sublane_multiple(x.dtype)
        tm = _round_up(min(m, 512), sub) if tm is None else tm
        tn = min(_round_up(d_out, 128), 512) if tn is None else tn
        plan = (tm, tn, tk, tk < d_in)
    elif m == 0 or d_in < 128 or d_out < 128:
        plan = None
    else:
        plan = _plan_tiles(m, d_in, d_out, x.dtype, out_dtype, budget)

    if plan is None:
        # Tiny / lane-sparse / non-fitting shapes: pallas_call fixed overhead
        # and masked lane stores would dominate, so let XLA's fused dot handle it.
        out = (jnp.dot(x2, w, preferred_element_type=jnp.float32)
               + b2.astype(jnp.float32)).astype(out_dtype)
        return out.reshape(*leading, d_out)

    tm, tn, tk, k_tiled = plan

    grid_m = pl.cdiv(m, tm)
    grid_n = pl.cdiv(d_out, tn)

    in_itemsize = jnp.dtype(x.dtype).itemsize
    out_itemsize = jnp.dtype(out_dtype).itemsize
    vmem_needed = _footprint_bytes(tm, tn, tk, k_tiled, in_itemsize, out_itemsize)
    vmem_limit = int(min(int(vmem_cap * 0.95),
                         max(32 * 2**20, int(1.3 * vmem_needed))))

    # Advisory only, but count the re-streamed traffic: x is re-read once per
    # N block, w once per M block.
    cost = pl.CostEstimate(
        flops=2 * m * d_in * d_out,
        transcendentals=0,
        bytes_accessed=(grid_n * m * d_in + grid_m * d_in * d_out
                        + grid_m * grid_n * d_out) * in_itemsize
                       + m * d_out * out_itemsize,
    )

    if k_tiled:
        grid = (grid_m, grid_n, d_in // tk)
        in_specs = [
            pl.BlockSpec((tm, tk), lambda i, j, k: (i, k)),   # x tile
            pl.BlockSpec((tk, tn), lambda i, j, k: (k, j)),   # weight tile
            pl.BlockSpec((1, tn), lambda i, j, k: (0, j)),    # bias row
        ]
        out_specs = pl.BlockSpec((tm, tn), lambda i, j, k: (i, j))
        scratch_shapes = [pltpu.VMEM((tm, tn), jnp.float32)]
        kernel = _linear_bias_acc_kernel
        dim_sem = ("parallel", "parallel", "arbitrary")
    else:
        grid = (grid_m, grid_n)
        in_specs = [
            pl.BlockSpec((tm, d_in), lambda i, j: (i, 0)),    # x stripe
            pl.BlockSpec((d_in, tn), lambda i, j: (0, j)),    # weight stripe
            pl.BlockSpec((1, tn), lambda i, j: (0, j)),       # bias row
        ]
        out_specs = pl.BlockSpec((tm, tn), lambda i, j: (i, j))
        scratch_shapes = []
        kernel = _linear_bias_kernel
        dim_sem = ("parallel", "parallel")

    out = pl.pallas_call(
        kernel,
        out_shape=jax.ShapeDtypeStruct((m, d_out), out_dtype),
        grid_spec=pltpu.PrefetchScalarGridSpec(
            num_scalar_prefetch=0,
            grid=grid,
            in_specs=in_specs,
            out_specs=out_specs,
            scratch_shapes=scratch_shapes,
        ),
        compiler_params=pltpu.CompilerParams(
            dimension_semantics=dim_sem,
            vmem_limit_bytes=vmem_limit,
        ),
        cost_estimate=cost,
    )(x2, w, b2)

    return out.reshape(*leading, d_out)


def init_params(key, d_in, d_out, w_init_std=0.02, dtype=jnp.float32):
    """Matches the PyTorch __init__: w ~ N(0, std), b = 0."""
    w = (w_init_std * jax.random.normal(key, (d_in, d_out))).astype(dtype)
    b = jnp.zeros((d_out,), dtype=dtype)
    return w, b


if __name__ == "__main__":
    key = jax.random.PRNGKey(0)
    k1, k2, k3, k4, k5, k6 = jax.random.split(key, 6)

    def ref(x, w, b):
        *lead, d_in = x.shape
        y = jnp.dot(x.reshape(-1, d_in), w,
                    precision=jax.lax.Precision.HIGHEST) + b
        return y.reshape(*lead, w.shape[1])

    # 1) Small shape, single-block 2-D grid (full-K, no accumulator).
    x = jax.random.normal(k1, (2, 8, 128), dtype=jnp.float32)
    w, b = init_params(k2, 128, 128)
    y = conv1d_forward(x, w, b)
    jax.block_until_ready(y)
    assert y.shape == (2, 8, 128), y.shape
    assert jnp.allclose(y, ref(x, w, b), atol=1e-4, rtol=1e-4)

    # 2) Multi-block grid with partial last M (1300 rows) and N (d_out=640) blocks.
    x2 = jax.random.normal(k3, (2, 650, 512), dtype=jnp.float32)
    w2, b2 = init_params(k4, 512, 640)
    y2 = conv1d_forward(x2, w2, b2)
    jax.block_until_ready(y2)
    assert y2.shape == (2, 650, 640), y2.shape
    assert jnp.allclose(y2, ref(x2, w2, b2), atol=1e-3, rtol=1e-3)

    # 3) Force the K-tiled accumulator path (3-D grid, bias folded at k==0).
    x3 = jax.random.normal(k5, (2, 64, 384), dtype=jnp.float32)
    w3, b3 = init_params(k6, 384, 256)
    y3 = conv1d_forward(x3, w3, b3, tm=128, tn=128, tk=128)
    jax.block_until_ready(y3)
    assert y3.shape == (2, 64, 256), y3.shape
    assert jnp.allclose(y3, ref(x3, w3, b3), atol=1e-3, rtol=1e-3)

    # 4) Tiny / lane-sparse shape -> jnp fallback (same semantics).
    x4 = jax.random.normal(k1, (2, 8, 32), dtype=jnp.float32)
    w4, b4 = init_params(k2, 32, 32)
    y4 = conv1d_forward(x4, w4, b4)
    jax.block_until_ready(y4)
    assert y4.shape == (2, 8, 32), y4.shape
    assert jnp.allclose(y4, ref(x4, w4, b4), atol=1e-5, rtol=1e-5)

    print("KERNEL_OK")
</pallas_src>

<mosaic_0001>
module attributes {stable_mosaic.version = 11 : i64} {
  func.func @_linear_bias_kernel(%arg0: i32, %arg1: i32, %arg2: memref<16x128xf32, #tpu.memory_space<vmem>>, %arg3: memref<128x128xf32, #tpu.memory_space<vmem>>, %arg4: memref<1x128xf32, #tpu.memory_space<vmem>>, %arg5: memref<16x128xf32, #tpu.memory_space<vmem>>) attributes {dimension_semantics = [#tpu.dimension_semantics<parallel>, #tpu.dimension_semantics<parallel>], iteration_bounds = array<i64: 1, 1>, scalar_prefetch = 0 : i64, scratch_operands = 0 : i64, tpu.core_type = #tpu.core_type<tc>, window_params = [{transform_indices = @transform_0, window_bounds = array<i64: 16, 128>}, {transform_indices = @transform_1, window_bounds = array<i64: 128, 128>}, {transform_indices = @transform_2, window_bounds = array<i64: 1, 128>}, {transform_indices = @transform_3, window_bounds = array<i64: 16, 128>}]} {
    %c0 = arith.constant 0 : index
    %c0_0 = arith.constant 0 : index
    %0 = vector.load %arg2[%c0, %c0_0] : memref<16x128xf32, #tpu.memory_space<vmem>>, vector<16x128xf32>
    %c0_1 = arith.constant 0 : index
    %c0_2 = arith.constant 0 : index
    %1 = vector.load %arg3[%c0_1, %c0_2] : memref<128x128xf32, #tpu.memory_space<vmem>>, vector<128x128xf32>
    %cst = arith.constant dense<0.000000e+00> : vector<16x128xf32>
    %2 = tpu.matmul %0, %1, %cst {dimension_numbers = #tpu.dot_dimension_numbers<[1], [0], [0], [1], [0, 0, 1, 1], [], []>} : vector<16x128xf32>, vector<128x128xf32>, vector<16x128xf32> -> vector<16x128xf32>
    %c0_3 = arith.constant 0 : index
    %c0_4 = arith.constant 0 : index
    %3 = vector.load %arg4[%c0_3, %c0_4] : memref<1x128xf32, #tpu.memory_space<vmem>>, vector<1x128xf32>
    %4 = vector.broadcast %3 : vector<1x128xf32> to vector<16x128xf32>
    %5 = arith.addf %2, %4 : vector<16x128xf32>
    %c0_5 = arith.constant 0 : index
    %c0_6 = arith.constant 0 : index
    %6 = vector.load %arg5[%c0_5, %c0_6] : memref<16x128xf32, #tpu.memory_space<vmem>>, vector<16x128xf32>
    tpu.vector_store %arg5[%c0_5, %c0_6], %5 {strides = array<i32>} : memref<16x128xf32, #tpu.memory_space<vmem>>, vector<16x128xf32>,
    return
  }
  func.func @transform_0(%arg0: i32, %arg1: i32) -> (i32, i32) {
    %c0_i32 = arith.constant 0 : i32
    %c0_i32_0 = arith.constant 0 : i32
    return %arg0, %c0_i32 : i32, i32
  }
  func.func @transform_1(%arg0: i32, %arg1: i32) -> (i32, i32) {
    %c0_i32 = arith.constant 0 : i32
    %c0_i32_0 = arith.constant 0 : i32
    return %c0_i32, %arg1 : i32, i32
  }
  func.func @transform_2(%arg0: i32, %arg1: i32) -> (i32, i32) {
    %c0_i32 = arith.constant 0 : i32
    %c0_i32_0 = arith.constant 0 : i32
    return %c0_i32, %arg1 : i32, i32
  }
  func.func @transform_3(%arg0: i32, %arg1: i32) -> (i32, i32) {
    %c0_i32 = arith.constant 0 : i32
    return %arg0, %arg1 : i32, i32
  }
}

</mosaic_0001>

<llo_original>
// kernel: conv1d_forward.1
$region0: #{conv1d_forward.1}
  #allocation0 [shape = 'u32[]', space=smem, size = 0x4, offset = 0x4, fixed_abs, tag = 'smem constant byte address 0x4 - core index']
  #allocation1 [shape = 'u32[144,128]{1,0:T(1,128)}', space=vmem, size = 0x12000, scoped, tag = 'internal scratch']
  %s0 = inlined_call_operand.hbm [shape: f32[16,128], index: 0, kind: input, shape index: {}]
  %s1 = inlined_call_operand.hbm [shape: f32[128,128], index: 1, kind: input, shape index: {}]
  %s2 = inlined_call_operand.vmem [shape: f32[1,128], index: 2, kind: input, shape index: {}]
  %s3 = inlined_call_operand.hbm [shape: f32[16,128], index: 3, kind: output, shape index: {}]
  %s4 = sld [smem:[#allocation0]]
  $region30: #{conv1d_forward.1} parent=0
    _
  %s6 = ssub.s32 1, %s4
  %s7 = scalar_select 0, %s6, %s4
  $region1: #{conv1d_forward.1} parent=0
    #allocation2 [shape = 'u8[8192]{0}', space=vmem, size = 0x2000, scoped, tag = 'input window, operand 0, single buffered']
    #allocation3 [shape = 's32[1]{0}', space=sflag, size = 0x4, scoped, tag = 'scoped memory for conv1d_forward.1']
    #allocation4 [shape = 's32[1]{0}', space=sflag, size = 0x4, scoped, tag = 'scoped memory for conv1d_forward.1']
    #allocation5 [shape = 'u8[65536]{0}', space=vmem, size = 0x10000, scoped, tag = 'input window, operand 1, single buffered']
    #allocation6 [shape = 's32[1]{0}', space=sflag, size = 0x4, scoped, tag = 'scoped memory for conv1d_forward.1']
    #allocation7 [shape = 'u8[8192]{0}', space=vmem, size = 0x2000, scoped, tag = 'output window, operand 0, single buffered']
    %8 = vsyncpa [#allocation3], 0
    %9 = vsyncpa [#allocation6], 0
    %10 = vsyncpa [#allocation4], 0
    // Predicated region
    $region2: #{conv1d_forward.1} parent=1 // pred_check
      _
    $region3: #{conv1d_forward.1} parent=1 // pred_check_branch
      %12 = sbr.rel (0) target = $region5
    $region4: #{conv1d_forward.1} parent=1 // pred_region
      %s14 = ssub.s32 256, 256
      %15 = vsyncadd [#allocation3], %s14
      %s16 = sshll.u32 [#allocation2], 4
      %s17 = int_to_ptr.vmem [resolvable:$true] %s16
      %22 = dma.hbm_to_vmem [thread:$0]  %s0, 256, %s17, [#allocation3], 128, 128, 8
    $region5: #{conv1d_forward.1} parent=1 // pred_fallthru
      _
    // Predicated region
    $region6: #{conv1d_forward.1} parent=1 // pred_check
      _
    $region7: #{conv1d_forward.1} parent=1 // pred_check_branch
      %24 = sbr.rel (0) target = $region9
    $region8: #{conv1d_forward.1} parent=1 // pred_region
      %s26 = ssub.s32 2048, 2048
      %27 = vsyncadd [#allocation6], %s26
      %s28 = sshll.u32 [#allocation5], 4
      %s29 = int_to_ptr.vmem [resolvable:$true] %s28
      %34 = dma.hbm_to_vmem [thread:$0]  %s1, 2048, %s29, [#allocation6], 128, 128, 8
    $region9: #{conv1d_forward.1} parent=1 // pred_fallthru
      _
    // Predicated region
    $region10: #{conv1d_forward.1} parent=1 // pred_check
      _
    $region11: #{conv1d_forward.1} parent=1 // pred_check_branch
      %36 = sbr.rel (0) target = $region13
    $region12: #{conv1d_forward.1} parent=1 // pred_region
      _
    $region13: #{conv1d_forward.1} parent=1 // pred_fallthru
      _
    // Predicated region
    $region14: #{conv1d_forward.1} parent=1 // pred_check
      _
    $region15: #{conv1d_forward.1} parent=1 // pred_check_branch
      %38 = sbr.rel (0) target = $region17
    $region16: #{conv1d_forward.1} parent=1 // pred_region
      %39 = dma.done [#allocation3], 256
    $region17: #{conv1d_forward.1} parent=1 // pred_fallthru
      _
    // Predicated region
    $region18: #{conv1d_forward.1} parent=1 // pred_check
      _
    $region19: #{conv1d_forward.1} parent=1 // pred_check_branch
      %41 = sbr.rel (0) target = $region21
    $region20: #{conv1d_forward.1} parent=1 // pred_region
      %42 = dma.done [#allocation6], 2048
    $region21: #{conv1d_forward.1} parent=1 // pred_fallthru
      _
    %v43 = vld [vmem:[#allocation2] sm:$0xff]
    %v44 = vld [vmem:[#allocation2 + $0x8] sm:$0xff]
    %v45 = vld [vmem:[#allocation5] sm:$0xff]
    %v46 = vld [vmem:[#allocation5 + $0x8] sm:$0xff]
    %v47 = vld [vmem:[#allocation5 + $0x10] sm:$0xff]
    %v48 = vld [vmem:[#allocation5 + $0x18] sm:$0xff]
    %v49 = vld [vmem:[#allocation5 + $0x20] sm:$0xff]
    %v50 = vld [vmem:[#allocation5 + $0x28] sm:$0xff]
    %v51 = vld [vmem:[#allocation5 + $0x30] sm:$0xff]
    %v52 = vld [vmem:[#allocation5 + $0x38] sm:$0xff]
    %v53 = vld [vmem:[#allocation5 + $0x40] sm:$0xff]
    %v54 = vld [vmem:[#allocation5 + $0x48] sm:$0xff]
    %v55 = vld [vmem:[#allocation5 + $0x50] sm:$0xff]
    %v56 = vld [vmem:[#allocation5 + $0x58] sm:$0xff]
    %v57 = vld [vmem:[#allocation5 + $0x60] sm:$0xff]
    %v58 = vld [vmem:[#allocation5 + $0x68] sm:$0xff]
    %v59 = vld [vmem:[#allocation5 + $0x70] sm:$0xff]
    %v60 = vld [vmem:[#allocation5 + $0x78] sm:$0xff]
    %v61 = vld [vmem:[%s2] sm:$0x1]
    %v63 = vlaneseq
    %v64 = vshrl.u32 %v63, 7
    %v65 = vsub.s32 0, %v64
    %v66 = vrot.slane %v61, %v65
    %68 = vmatprep.subr.mxu0 0.0
    %69 = vmatpush1.msra.mxu0 %v60
    %70 = vmatprep.subr.mxu0 0.0
    %71 = vmatpush1.msra.mxu0 %v59
    %72 = vmatprep.subr.mxu0 0.0
    %73 = vmatpush1.msra.mxu0 %v58
    %74 = vmatprep.subr.mxu0 0.0
    %75 = vmatpush1.msra.mxu0 %v57
    %76 = vmatprep.subr.mxu0 0.0
    %77 = vmatpush1.msra.mxu0 %v56
    %78 = vmatprep.subr.mxu0 0.0
    %79 = vmatpush1.msra.mxu0 %v55
    %80 = vmatprep.subr.mxu0 0.0
    %81 = vmatpush1.msra.mxu0 %v54
    %82 = vmatprep.subr.mxu0 0.0
    %83 = vmatpush1.msra.mxu0 %v53
    %84 = vmatprep.subr.mxu0 0.0
    %85 = vmatpush1.msra.mxu0 %v52
    %86 = vmatprep.subr.mxu0 0.0
    %87 = vmatpush1.msra.mxu0 %v51
    %88 = vmatprep.subr.mxu0 0.0
    %89 = vmatpush1.msra.mxu0 %v50
    %90 = vmatprep.subr.mxu0 0.0
    %91 = vmatpush1.msra.mxu0 %v49
    %92 = vmatprep.subr.mxu0 0.0
    %93 = vmatpush1.msra.mxu0 %v48
    %94 = vmatprep.subr.mxu0 0.0
    %95 = vmatpush1.msra.mxu0 %v47
    %96 = vmatprep.subr.mxu0 0.0
    %97 = vmatpush1.msra.mxu0 %v46
    %98 = vmatprep.subr.mxu0 0.0
    %99 = vmatpush1.msra.mxu0 %v45
    %100 = vmatprep.subr.mxu0 0.0
    %101 = vmatpush2.msra.mxu0 0.0
    %102 = vmatprep.subr.mxu0 0.0
    %103 = vmatpush2.msra.mxu0 0.0
    %104 = vmatprep.subr.mxu0 0.0
    %105 = vmatpush2.msra.mxu0 0.0
    %106 = vmatprep.subr.mxu0 0.0
    %107 = vmatpush2.msra.mxu0 0.0
    %108 = vmatprep.subr.mxu0 0.0
    %109 = vmatpush2.msra.mxu0 0.0
    %110 = vmatprep.subr.mxu0 0.0
    %111 = vmatpush2.msra.mxu0 0.0
    %112 = vmatprep.subr.mxu0 0.0
    %113 = vmatpush2.msra.mxu0 0.0
    %114 = vmatprep.subr.mxu0 0.0
    %115 = vmatpush2.msra.mxu0 0.0
    %116 = vmatprep.subr.mxu0 0.0
    %117 = vmatpush2.msra.mxu0 0.0
    %118 = vmatprep.subr.mxu0 0.0
    %119 = vmatpush2.msra.mxu0 0.0
    %120 = vmatprep.subr.mxu0 0.0
    %121 = vmatpush2.msra.mxu0 0.0
    %122 = vmatprep.subr.mxu0 0.0
    %123 = vmatpush2.msra.mxu0 0.0
    %124 = vmatprep.subr.mxu0 0.0
    %125 = vmatpush2.msra.mxu0 0.0
    %126 = vmatprep.subr.mxu0 0.0
    %127 = vmatpush2.msra.mxu0 0.0
    %128 = vmatprep.subr.mxu0 0.0
    %129 = vmatpush2.msra.mxu0 0.0
    %130 = vmatprep.subr.mxu0 0.0
    %131 = vmatpush2.msra.mxu0 0.0
    %132 = vmatprep.mubr.f32.mxu0 0.0
    %133 = vmatmul.mubr.f32.gmra.mxu0 %v43
    %v134 = vpop.f32.mrf.mxu0
    %v135 = vadd.f32 %v66, %v134
    %v136 = vpop.f32.mrf.mxu0
    %137 = vmatprep.mubr.f32.mxu0 0.0
    %138 = vmatmul.mubr.f32.gmra.mxu0 %v44
    %v139 = vpop.f32.mrf.mxu0
    %v140 = vadd.f32 %v66, %v139
    %v141 = vpop.f32.mrf.mxu0
    %142 = vdwg.mxu0
    %143 = vst [vmem:[#allocation7] sm:$0xff] %v135
    %144 = vst [vmem:[#allocation7 + $0x8] sm:$0xff] %v140
    // Predicated region
    $region22: #{conv1d_forward.1} parent=1 // pred_check
      _
    $region23: #{conv1d_forward.1} parent=1 // pred_check_branch
      %146 = sbr.rel (0) target = $region25
    $region24: #{conv1d_forward.1} parent=1 // pred_region
      %s148 = ssub.s32 256, 256
      %149 = vsyncadd [#allocation4], %s148
      %s150 = sshll.u32 [#allocation7], 4
      %s151 = int_to_ptr.vmem [resolvable:$true] %s150
      %156 = dma.vmem_to_hbm [thread:$0]  %s151, 256, %s3, [#allocation4], 128, 128, 8
    $region25: #{conv1d_forward.1} parent=1 // pred_fallthru
      _
    // Predicated region
    $region26: #{conv1d_forward.1} parent=1 // pred_check
      _
    $region27: #{conv1d_forward.1} parent=1 // pred_check_branch
      %158 = sbr.rel (0) target = $region29
    $region28: #{conv1d_forward.1} parent=1 // pred_region
      %159 = dma.done [#allocation4], 256
    $region29: #{conv1d_forward.1} parent=1 // pred_fallthru
      _
    %160 = vsyncpa [#allocation3], 1
    %161 = vsyncpa [#allocation6], 1
    %162 = vsyncpa [#allocation4], 1

</llo_original>
